<compile_context>
chip_gen: v6e
topology: v6e:2x2x1
jax: 0.10.0
libtpu: 0.0.40
codegen_flags: <defaults>
</compile_context>

<pallas_src>
import functools

import jax
import jax.numpy as jnp
import numpy as np
from jax.experimental import pallas as pl
from jax.experimental.pallas import tpu as pltpu


_DMA_CLIP_BYTES = 16 * 1024  # per-clip / per-D-tile threshold for the DMA path


def _round_up(x: int, m: int) -> int:
    return (x + m - 1) // m * m


def _sublane_multiple(dtype) -> int:
    # Sub-32-bit dtypes pack along sublanes: f32 -> 8, bf16 -> 16, int8/fp8 -> 32.
    return max(8, 32 // jnp.dtype(dtype).itemsize)


def _physical_vmem_bytes() -> int:
    try:
        info = pltpu.get_tpu_info()
        cap = getattr(info, "vmem_capacity_bytes", None)
        if cap:
            return int(cap)
    except Exception:
        pass
    return 64 * 1024 * 1024  # v7x floor (most restrictive generation)


def _clips_vreg_kernel(off_ref, motion_ref, out_ref, *, w_slot, num_clips, align):
    """Small-window path: per-clip vreg copies within a VMEM-resident row.

    off_ref:    SMEM (B*num_clips,) int32           -- per-clip start frames
    motion_ref: VMEM (1, T_in, TILE_D)               -- this batch row / D tile
    out_ref:    VMEM (1, num_clips*w_slot, TILE_D)   -- dense output slab
    """
    b = pl.program_id(0)
    base = b * num_clips

    def body(i, carry):
        off = off_ref[base + i]
        # Destination slots are w_slot-strided with w_slot % align == 0, so every
        # store covers full sublane groups (unmasked vst); loads stay masked
        # because the source offset is random -- unavoidable.
        dst = pl.multiple_of(i * w_slot, align)
        out_ref[0, pl.ds(dst, w_slot), :] = motion_ref[0, pl.ds(off, w_slot), :]
        return carry

    # Partial unroll: LLO scheduling visibility without vreg spills for large
    # num_clips and without the fully-rolled-loop cliff for num_clips > 32.
    jax.lax.fori_loop(0, num_clips, body, None, unroll=min(num_clips, 8))


def _clips_dma_kernel(off_ref, motion_hbm, out_ref, sem, *,
                      w_slot, num_clips, align, tile_d):
    """Large-window path: double-buffered DMA gather straight from HBM.

    off_ref:    SMEM (B*num_clips,) int32
    motion_hbm: HBM  (B, T_in, D_pad)   (memory_space=pl.ANY, never in VMEM)
    out_ref:    VMEM (1, num_clips*w_slot, TILE_D)
    sem:        DMA semaphores (2,)
    """
    b = pl.program_id(0)
    d0 = pl.multiple_of(pl.program_id(1) * tile_d, 128)
    base = b * num_clips

    def copy(i, slot):
        off = off_ref[base + i]
        dst = pl.multiple_of(i * w_slot, align)
        return pltpu.make_async_copy(
            motion_hbm.at[b, pl.ds(off, w_slot), pl.ds(d0, tile_d)],
            out_ref.at[0, pl.ds(dst, w_slot), :],
            sem.at[slot],
        )

    copy(0, 0).start()

    def body(i, carry):
        slot = i & 1

        @pl.when(i + 1 < num_clips)
        def _():
            copy(i + 1, 1 - slot).start()

        copy(i, slot).wait()
        return carry

    jax.lax.fori_loop(0, num_clips, body, None)


def create_random_clips(motion: jax.Array, window_size: int, key: jax.Array):
    """Pallas implementation of CreateRandomClips.forward.

    motion: (B, T, D). Returns (clips, offsets): clips has shape
    (B * (T // window_size), window_size, D); offsets is the flat (b-major,
    clip-minor) int32 vector of sampled window starts.
    """
    B, T, D = motion.shape
    if T < window_size:
        raise ValueError(f"T={T} must be >= window_size={window_size}")
    max_offset = T - window_size
    num_clips = T // window_size
    n_out = B * num_clips

    dtype = motion.dtype
    itemsize = jnp.dtype(dtype).itemsize
    align = _sublane_multiple(dtype)

    # Pad each clip's output slot to a full sublane group (unmasked stores) and
    # the feature axis to a full lane group (lane-dense stores).
    w_slot = _round_up(window_size, align)
    t_in = T + (w_slot - window_size)          # so reading w_slot rows never OOBs
    d_pad = _round_up(D, 128)
    out_rows = num_clips * w_slot

    phys_vmem = _physical_vmem_bytes()
    vmem_budget = int(phys_vmem * 0.85)

    def _path_and_need(tile_d):
        clip_bytes = w_slot * tile_d * itemsize
        use_dma = clip_bytes >= _DMA_CLIP_BYTES
        if use_dma:
            # Only the output block is pipelined; motion stays in HBM.
            need = 2 * out_rows * tile_d * itemsize
        else:
            # Double-buffered (1, t_in, tile_d) input + (1, out_rows, tile_d) out.
            need = 2 * (t_in + out_rows) * tile_d * itemsize
        return use_dma, need + (2 << 20)  # headroom for descriptors / scratch

    # D tile: largest multiple-of-128 divisor of d_pad (<= 512) that fits VMEM.
    cands = [d for d in range(128, min(d_pad, 512) + 1, 128) if d_pad % d == 0]
    tile_d = None
    use_dma = False
    vmem_need = 0
    for cand in sorted(cands, reverse=True):
        use_dma, vmem_need = _path_and_need(cand)
        if vmem_need <= vmem_budget:
            tile_d = cand
            break
    if tile_d is None:
        tile_d = 128
        use_dma, vmem_need = _path_and_need(tile_d)
        if not use_dma and vmem_need > vmem_budget:
            # The VMEM-resident row doesn't fit even at a 128-wide D tile:
            # switch to the HBM DMA-gather path (no input row in VMEM at all).
            use_dma = True
            vmem_need = 2 * out_rows * tile_d * itemsize + (2 << 20)
        # TODO(synk): also tile the clip axis (grid over clips) if the output
        # slab alone still overflows this chip's VMEM.
    n_d = d_pad // tile_d
    vmem_limit = int(min(max(vmem_need, 16 * 1024 * 1024), vmem_budget))

    # Pad motion (zeros): extra frames so w_slot-row reads stay in bounds, extra
    # channels so the lane dim is a multiple of 128.
    if t_in != T or d_pad != D:
        motion_p = jnp.pad(motion, ((0, 0), (0, t_in - T), (0, d_pad - D)))
    else:
        motion_p = motion

    # One independent offset per (batch, clip), flat 1D for cheap SMEM residency.
    # PyTorch draws np.random.randint(max_offset) per clip (exclusive bound);
    # T == window_size (max_offset == 0) would crash numpy, we use offset 0.
    if max_offset > 0:
        offsets = jax.random.randint(key, (n_out,), 0, max_offset, dtype=jnp.int32)
    else:
        offsets = jnp.zeros((n_out,), dtype=jnp.int32)

    out_spec = pl.BlockSpec((1, out_rows, tile_d), lambda b, d, off: (b, 0, d))

    if use_dma:
        kernel = functools.partial(
            _clips_dma_kernel, w_slot=w_slot, num_clips=num_clips,
            align=align, tile_d=tile_d)
        in_specs = [pl.BlockSpec(memory_space=pl.ANY)]
        scratch_shapes = [pltpu.SemaphoreType.DMA((2,))]
        read_bytes = n_out * w_slot * d_pad * itemsize
    else:
        kernel = functools.partial(
            _clips_vreg_kernel, w_slot=w_slot, num_clips=num_clips, align=align)
        in_specs = [pl.BlockSpec((1, t_in, tile_d), lambda b, d, off: (b, 0, d))]
        scratch_shapes = []
        read_bytes = B * t_in * d_pad * itemsize
    write_bytes = B * out_rows * d_pad * itemsize

    out = pl.pallas_call(
        kernel,
        out_shape=jax.ShapeDtypeStruct((B, out_rows, d_pad), dtype),
        grid_spec=pltpu.PrefetchScalarGridSpec(
            num_scalar_prefetch=1,
            grid=(B, n_d),
            in_specs=in_specs,
            out_specs=out_spec,
            scratch_shapes=scratch_shapes,
        ),
        compiler_params=pltpu.CompilerParams(
            # Independent (batch, D-tile) steps: megacore shards both on v7x.
            dimension_semantics=("parallel", "parallel"),
            vmem_limit_bytes=vmem_limit,
        ),
        cost_estimate=pl.CostEstimate(
            flops=0, transcendentals=0,
            bytes_accessed=read_bytes + write_bytes,
        ),
    )(offsets, motion_p)

    # (B, num_clips*w_slot, D_pad) -> strip sublane/lane padding -> clips.
    clips = out.reshape(B, num_clips, w_slot, d_pad)
    if w_slot != window_size or d_pad != D:
        clips = clips[:, :, :window_size, :D]
    clips = clips.reshape(n_out, window_size, D)
    return clips, offsets


def _reference(motion_np, offsets_np, window_size):
    B, T, _ = motion_np.shape
    num_clips = T // window_size
    ref, idx = [], 0
    for b in range(B):
        for _ in range(num_clips):
            o = int(offsets_np[idx]); idx += 1
            ref.append(motion_np[b, o:o + window_size, :])
    return np.stack(ref, axis=0)


if __name__ == "__main__":
    root = jax.random.PRNGKey(0)
    cases = [
        # (B, T, D, W): small window -> VMEM-resident vreg-copy path
        (2, 16, 128, 4),
        # large window -> HBM DMA-gather path (double-buffered make_async_copy)
        (2, 128, 256, 32),
    ]
    for case_idx, (B, T, D, W) in enumerate(cases):
        k_motion, k_off = jax.random.split(jax.random.fold_in(root, case_idx))
        motion = jax.random.normal(k_motion, (B, T, D), dtype=jnp.float32)

        clips, offsets = create_random_clips(motion, W, k_off)
        clips = jax.block_until_ready(clips)

        ref = _reference(np.asarray(motion), np.asarray(offsets), W)
        np.testing.assert_allclose(np.asarray(clips), ref, rtol=0, atol=0)
        assert clips.shape == (B * (T // W), W, D)

    print("KERNEL_OK")
</pallas_src>

<mosaic_0001>
module attributes {stable_mosaic.version = 11 : i64} {
  func.func @_clips_vreg_kernel(%arg0: i32, %arg1: i32, %arg2: memref<8xi32, #tpu.memory_space<smem>>, %arg3: memref<1x20x128xf32, #tpu.memory_space<vmem>>, %arg4: memref<1x32x128xf32, #tpu.memory_space<vmem>>) attributes {dimension_semantics = [#tpu.dimension_semantics<parallel>, #tpu.dimension_semantics<parallel>], iteration_bounds = array<i64: 2, 1>, scalar_prefetch = 1 : i64, scratch_operands = 0 : i64, tpu.core_type = #tpu.core_type<tc>, window_params = [{transform_indices = @transform_0, window_bounds = array<i64: 1, 20, 128>}, {transform_indices = @transform_1, window_bounds = array<i64: 1, 32, 128>}]} {
    %c4_i32 = arith.constant 4 : i32
    %0 = arith.muli %arg0, %c4_i32 : i32
    %c0_i32 = arith.constant 0 : i32
    %1 = arith.addi %0, %c0_i32 : i32
    %2 = arith.index_cast %1 : i32 to index
    %3 = memref.load %arg2[%2] : memref<8xi32, #tpu.memory_space<smem>>
    %c8_i32 = arith.constant 8 : i32
    %4 = arith.muli %c0_i32, %c8_i32 : i32
    %5 = tpu.assume_multiple %4, 8 : i32
    %c0 = arith.constant 0 : index
    %6 = arith.index_cast %3 : i32 to index
    %c0_0 = arith.constant 0 : index
    %7 = vector.load %arg3[%c0, %6, %c0_0] : memref<1x20x128xf32, #tpu.memory_space<vmem>>, vector<1x8x128xf32>
    %8 = vector.shape_cast %7 : vector<1x8x128xf32> to vector<8x128xf32>
    %c0_1 = arith.constant 0 : index
    %9 = arith.index_cast %5 : i32 to index
    %c0_2 = arith.constant 0 : index
    %10 = vector.load %arg4[%c0_1, %9, %c0_2] : memref<1x32x128xf32, #tpu.memory_space<vmem>>, vector<1x8x128xf32>
    %11 = vector.shape_cast %10 : vector<1x8x128xf32> to vector<8x128xf32>
    %12 = vector.shape_cast %8 : vector<8x128xf32> to vector<1x8x128xf32>
    tpu.vector_store %arg4[%c0_1, %9, %c0_2], %12 {strides = array<i32>} : memref<1x32x128xf32, #tpu.memory_space<vmem>>, vector<1x8x128xf32>,
    %c1_i32 = arith.constant 1 : i32
    %13 = arith.addi %0, %c1_i32 : i32
    %14 = arith.index_cast %13 : i32 to index
    %15 = memref.load %arg2[%14] : memref<8xi32, #tpu.memory_space<smem>>
    %c8_i32_3 = arith.constant 8 : i32
    %16 = arith.muli %c1_i32, %c8_i32_3 : i32
    %17 = tpu.assume_multiple %16, 8 : i32
    %c0_4 = arith.constant 0 : index
    %18 = arith.index_cast %15 : i32 to index
    %c0_5 = arith.constant 0 : index
    %19 = vector.load %arg3[%c0_4, %18, %c0_5] : memref<1x20x128xf32, #tpu.memory_space<vmem>>, vector<1x8x128xf32>
    %20 = vector.shape_cast %19 : vector<1x8x128xf32> to vector<8x128xf32>
    %c0_6 = arith.constant 0 : index
    %21 = arith.index_cast %17 : i32 to index
    %c0_7 = arith.constant 0 : index
    %22 = vector.load %arg4[%c0_6, %21, %c0_7] : memref<1x32x128xf32, #tpu.memory_space<vmem>>, vector<1x8x128xf32>
    %23 = vector.shape_cast %22 : vector<1x8x128xf32> to vector<8x128xf32>
    %24 = vector.shape_cast %20 : vector<8x128xf32> to vector<1x8x128xf32>
    tpu.vector_store %arg4[%c0_6, %21, %c0_7], %24 {strides = array<i32>} : memref<1x32x128xf32, #tpu.memory_space<vmem>>, vector<1x8x128xf32>,
    %c2_i32 = arith.constant 2 : i32
    %25 = arith.addi %0, %c2_i32 : i32
    %26 = arith.index_cast %25 : i32 to index
    %27 = memref.load %arg2[%26] : memref<8xi32, #tpu.memory_space<smem>>
    %c8_i32_8 = arith.constant 8 : i32
    %28 = arith.muli %c2_i32, %c8_i32_8 : i32
    %29 = tpu.assume_multiple %28, 8 : i32
    %c0_9 = arith.constant 0 : index
    %30 = arith.index_cast %27 : i32 to index
    %c0_10 = arith.constant 0 : index
    %31 = vector.load %arg3[%c0_9, %30, %c0_10] : memref<1x20x128xf32, #tpu.memory_space<vmem>>, vector<1x8x128xf32>
    %32 = vector.shape_cast %31 : vector<1x8x128xf32> to vector<8x128xf32>
    %c0_11 = arith.constant 0 : index
    %33 = arith.index_cast %29 : i32 to index
    %c0_12 = arith.constant 0 : index
    %34 = vector.load %arg4[%c0_11, %33, %c0_12] : memref<1x32x128xf32, #tpu.memory_space<vmem>>, vector<1x8x128xf32>
    %35 = vector.shape_cast %34 : vector<1x8x128xf32> to vector<8x128xf32>
    %36 = vector.shape_cast %32 : vector<8x128xf32> to vector<1x8x128xf32>
    tpu.vector_store %arg4[%c0_11, %33, %c0_12], %36 {strides = array<i32>} : memref<1x32x128xf32, #tpu.memory_space<vmem>>, vector<1x8x128xf32>,
    %c3_i32 = arith.constant 3 : i32
    %37 = arith.addi %0, %c3_i32 : i32
    %38 = arith.index_cast %37 : i32 to index
    %39 = memref.load %arg2[%38] : memref<8xi32, #tpu.memory_space<smem>>
    %c8_i32_13 = arith.constant 8 : i32
    %40 = arith.muli %c3_i32, %c8_i32_13 : i32
    %41 = tpu.assume_multiple %40, 8 : i32
    %c0_14 = arith.constant 0 : index
    %42 = arith.index_cast %39 : i32 to index
    %c0_15 = arith.constant 0 : index
    %43 = vector.load %arg3[%c0_14, %42, %c0_15] : memref<1x20x128xf32, #tpu.memory_space<vmem>>, vector<1x8x128xf32>
    %44 = vector.shape_cast %43 : vector<1x8x128xf32> to vector<8x128xf32>
    %c0_16 = arith.constant 0 : index
    %45 = arith.index_cast %41 : i32 to index
    %c0_17 = arith.constant 0 : index
    %46 = vector.load %arg4[%c0_16, %45, %c0_17] : memref<1x32x128xf32, #tpu.memory_space<vmem>>, vector<1x8x128xf32>
    %47 = vector.shape_cast %46 : vector<1x8x128xf32> to vector<8x128xf32>
    %48 = vector.shape_cast %44 : vector<8x128xf32> to vector<1x8x128xf32>
    tpu.vector_store %arg4[%c0_16, %45, %c0_17], %48 {strides = array<i32>} : memref<1x32x128xf32, #tpu.memory_space<vmem>>, vector<1x8x128xf32>,
    %c4_i32_18 = arith.constant 4 : i32
    return
  }
  func.func @transform_0(%arg0: i32, %arg1: i32, %arg2: memref<8xi32, #tpu.memory_space<smem>>) -> (i32, i32, i32) {
    %c0_i32 = arith.constant 0 : i32
    %c0_i32_0 = arith.constant 0 : i32
    return %arg0, %c0_i32, %arg1 : i32, i32, i32
  }
  func.func @transform_1(%arg0: i32, %arg1: i32, %arg2: memref<8xi32, #tpu.memory_space<smem>>) -> (i32, i32, i32) {
    %c0_i32 = arith.constant 0 : i32
    %c0_i32_0 = arith.constant 0 : i32
    return %arg0, %c0_i32, %arg1 : i32, i32, i32
  }
}

</mosaic_0001>

<llo_original>
// kernel: tpu_custom_call.1
$region0: #{tpu_custom_call.1}
  #allocation0 [shape = 'u32[]', space=smem, size = 0x4, offset = 0x4, fixed_abs, tag = 'smem constant byte address 0x4 - core index']
  #allocation1 [shape = 'u32[144,128]{1,0:T(1,128)}', space=vmem, size = 0x12000, scoped, tag = 'internal scratch']
  #allocation2 [shape = 's32[1]{0}', space=sflag, size = 0x4, scoped, tag = 'scoped memory for tpu_custom_call.1']
  #allocation3 [shape = 'u8[512]{0}', space=smem, size = 0x200, scoped, tag = 'prefetched SMEM operand 0']
  %s0 = inlined_call_operand.vmem [shape: s32[8], index: 0, kind: input, shape index: {}]
  %s1 = inlined_call_operand.vmem [shape: f32[2,20,128], index: 1, kind: input, shape index: {}]
  %s2 = inlined_call_operand.hbm [shape: f32[2,32,128], index: 2, kind: output, shape index: {}]
  %s3 = sld [smem:[#allocation0]]
  $region37: #{tpu_custom_call.1} parent=0
    _
  %s5 = ssub.s32 1, %s3
  %s6 = scalar_select 0, %s5, %s3
  %s7 = sshll.u32 %s0, 4
  %s8 = int_to_ptr.vmem [resolvable:$true] %s7
  %10 = dma.vmem_to_smem %s8, 16, [#allocation3], [#allocation2]
  %11 = dma.done [#allocation2], 16
  %12 = sfence
  $region1: #{tpu_custom_call.1} parent=0
    #allocation4 [shape = 'u8[32768]{0}', space=vmem, size = 0x8000, scoped, tag = 'output window, operand 0']
    #allocation5 [shape = 's32[2]{0}', space=sflag, size = 0x8, scoped, tag = 'scoped memory for tpu_custom_call.1']
    %13 = vsyncpa [#allocation5], 0
    %s14 = scalar_lea.sflag [#allocation5], 1
    %15 = vsyncpa %s14, 0
    loop: start=0, step=1, limit=4
    $region2: #{tpu_custom_call.1} parent=1 // loop_pre_header
      _
    $region3: #{tpu_custom_call.1} parent=1 // loop_header
      %s17 = sphi 0, %s21
      %p18 = scmp.ge.s32.totalorder %s17, 4
      %s24 = sphi 0, %s36
      %s25 = sphi 0, %s32
      %s26 = sphi 0, %s24
      %s27 = sphi 0, %s25
      %s28 = sphi 0, %s26
      %s29 = sphi 0, %s27
      %s41 = sphi 0, %s43
      %s44 = sphi 0, %s41
      %s45 = sphi 0, %s44
      %s61 = sphi 0, %s45
      %s69 = sphi 0, %s71
      %s72 = sphi 0, %s69
      %s73 = sphi 0, %s72
      %s89 = sphi 0, %s73
    $region4: #{tpu_custom_call.1} parent=1 // loop_header_branch
      %20 = sbr.rel (%p18) target = $region8
    $region5: #{tpu_custom_call.1} parent=1 // loop_body
      %s22 = ssub.s32 %s17, 1
      %s23 = ssub.s32 %s17, 2
      %s30 = sadd.s32 1, %s25
      %p31 = scmp.ge.s32.totalorder %s30, 1
      %s32 = scalar_select %p31, 0, %s30
      %s33 = sadd.s32 1, %s24
      %s34 = scalar_select %p31, %s33, %s24
      %p35 = scmp.ge.s32.totalorder %s34, 2
      %s36 = scalar_select %p35, 0, %s34
      %s37 = ssub.s32 %s24, %s36
      %s38 = ssub.s32 %s25, %s32
      %s39 = sor.u32 %s37, %s38
      %p40 = scmp.eq.s32.totalorder %s39, 0
      %s42 = sadd.s32 %s41, 1
      %s43 = scalar_select %p40, %s41, %s42
      %p46 = pneg %p40
      %p47 = scmp.eq.s32.totalorder %s17, 1
      %p48 = por %p46, %p47
      %p49 = scmp.ne.s32.totalorder %s41, %s44
      %p50 = scmp.eq.s32.totalorder %s17, 0
      %p51 = por %p49, %p50
      %p52 = scmp.ne.s32.totalorder %s41, %s44
      %p53 = scmp.eq.s32.totalorder %s22, 1
      %p54 = por %p52, %p53
      %p55 = scmp.ne.s32.totalorder %s44, %s45
      %p56 = scmp.eq.s32.totalorder %s22, 0
      %p57 = por %p55, %p56
      %p58 = scmp.ne.s32.totalorder %s44, %s45
      %p59 = scmp.eq.s32.totalorder %s23, 1
      %p60 = por %p58, %p59
      %p62 = scmp.ne.s32.totalorder %s45, %s61
      %p63 = scmp.eq.s32.totalorder %s23, 0
      %p64 = por %p62, %p63
      %s65 = ssub.s32 %s24, %s36
      %s66 = ssub.s32 %s25, %s32
      %s67 = sor.u32 %s65, %s66
      %p68 = scmp.eq.s32.totalorder %s67, 0
      %s70 = sadd.s32 %s69, 1
      %s71 = scalar_select %p68, %s69, %s70
      %p74 = pneg %p68
      %p75 = scmp.eq.s32.totalorder %s17, 1
      %p76 = por %p74, %p75
      %p77 = scmp.ne.s32.totalorder %s69, %s72
      %p78 = scmp.eq.s32.totalorder %s17, 0
      %p79 = por %p77, %p78
      %p80 = scmp.ne.s32.totalorder %s69, %s72
      %p81 = scmp.eq.s32.totalorder %s22, 1
      %p82 = por %p80, %p81
      %p83 = scmp.ne.s32.totalorder %s72, %s73
      %p84 = scmp.eq.s32.totalorder %s22, 0
      %p85 = por %p83, %p84
      %p86 = scmp.ne.s32.totalorder %s72, %s73
      %p87 = scmp.eq.s32.totalorder %s23, 1
      %p88 = por %p86, %p87
      %p90 = scmp.ne.s32.totalorder %s73, %s89
      %p91 = scmp.eq.s32.totalorder %s23, 0
      %p92 = por %p90, %p91
      %p93 = scmp.le.s32.totalorder 1, %s17
      %p94 = scmp.lt.s32.totalorder %s17, 3
      %p95 = pnand %p93, %p94
      %p96 = pneg %p95
      // Predicated region
      $region9: #{tpu_custom_call.1} parent=5 // pred_check
        _
      $region10: #{tpu_custom_call.1} parent=5 // pred_check_branch
        %98 = sbr.rel (%p95) target = $region12
      $region11: #{tpu_custom_call.1} parent=5 // pred_region
        %s99 = ssub.s32 %s17, 1
      $region12: #{tpu_custom_call.1} parent=5 // pred_fallthru
        _
      %p100 = scmp.lt.s32.totalorder %s17, 2
      // Predicated region
      $region13: #{tpu_custom_call.1} parent=5 // pred_check
        %p101 = pneg %p100
      $region14: #{tpu_custom_call.1} parent=5 // pred_check_branch
        %103 = sbr.rel (%p101) target = $region16
      $region15: #{tpu_custom_call.1} parent=5 // pred_region
        // Predicated region
        $region17: #{tpu_custom_call.1} parent=15 // pred_check
          %p104 = pneg %p51
        $region18: #{tpu_custom_call.1} parent=15 // pred_check_branch
          %106 = sbr.rel (%p104) target = $region20
        $region19: #{tpu_custom_call.1} parent=15 // pred_region
          %p107 = scmp.lt.s32.totalorder %s24, 1
          %s108 = scalar_select %p107, %s24, 1
          %p109 = scmp.lt.s32.totalorder %s25, 0
          %s110 = scalar_select %p109, %s25, 0
          %s111 = smul.addr %s108, 3
          %s112 = sadd.s32 %s110, %s111
          %s113 = smul.addr %s112, 8
          %s114 = scalar_lea.vmem %s1, %s113
        $region20: #{tpu_custom_call.1} parent=15 // pred_fallthru
          _
      $region16: #{tpu_custom_call.1} parent=5 // pred_fallthru
        _
      %p115 = scmp.le.s32.totalorder 1, %s17
      %p116 = scmp.lt.s32.totalorder %s17, 3
      %p117 = pnand %p115, %p116
      %p118 = pneg %p117
      // Predicated region
      $region21: #{tpu_custom_call.1} parent=5 // pred_check
        _
      $region22: #{tpu_custom_call.1} parent=5 // pred_check_branch
        %120 = sbr.rel (%p117) target = $region24
      $region23: #{tpu_custom_call.1} parent=5 // pred_region
        %s121 = ssub.s32 %s17, 1
        %p122 = scmp.lt.s32.totalorder %s26, 1
        %s123 = scalar_select %p122, %s26, 1
        %p124 = scmp.lt.s32.totalorder %s27, 0
        %s125 = scalar_select %p124, %s27, 0
        %s126 = smul.addr %s123, 3
        %s127 = sadd.s32 %s125, %s126
        %s128 = smul.addr %s127, 8
        %s129 = scalar_lea.vmem %s1, %s128
        %p130 = pneg %p57
        %p131 = pneg %p54
        %p132 = pneg %p85
        %p133 = pneg %p82
        %s134 = sand.u32 %s72, 1
        %s135 = scalar_lea.sflag [#allocation5], %s134
        %s136 = sand.u32 %s72, 1
        %s137 = smul.addr %s136, 32
        %s138 = scalar_lea.vmem [#allocation4], %s137
        %p139 = scmp.lt.s32.totalorder %s26, 1
        %s140 = scalar_select %p139, %s26, 1
        %p141 = scmp.lt.s32.totalorder %s27, 0
        %s142 = scalar_select %p141, %s27, 0
        %s143 = smul.addr %s140, 3
        %s144 = sadd.s32 %s142, %s143
        %s145 = smul.addr %s144, 8
        %s146 = scalar_lea.vmem %s1, %s145
        %s147 = smul.u32 %s26, 4
        %s148 = sld [smem:[#allocation3 + %s147]]
        %s149 = scalar_lea.vmem %s146, %s148
        %v150 = vld [vmem:[%s149] sm:$0xff]
        %151 = vst [vmem:[%s138] sm:$0xff] %v150
        %s152 = sadd.s32 %s147, 1
        %s153 = sld [smem:[#allocation3 + %s152]]
        %s154 = scalar_lea.vmem %s146, %s153
        %v155 = vld [vmem:[%s154] sm:$0xff]
        %s156 = scalar_lea.vmem %s138, 8 [#allocation4]
        %157 = vst [vmem:[%s156] sm:$0xff] %v155
        %s158 = sadd.s32 %s147, 2
        %s159 = sld [smem:[#allocation3 + %s158]]
        %s160 = scalar_lea.vmem %s146, %s159
        %v161 = vld [vmem:[%s160] sm:$0xff]
        %s162 = scalar_lea.vmem %s138, 16 [#allocation4]
        %163 = vst [vmem:[%s162] sm:$0xff] %v161
        %s164 = sadd.s32 %s147, 3
        %s165 = sld [smem:[#allocation3 + %s164]]
        %s166 = scalar_lea.vmem %s146, %s165
        %v167 = vld [vmem:[%s166] sm:$0xff]
        %s168 = scalar_lea.vmem %s138, 24 [#allocation4]
        %169 = vst [vmem:[%s168] sm:$0xff] %v167
        %s170 = sand.u32 %s72, 1
        %s171 = scalar_lea.sflag [#allocation5], %s170
        %s172 = sand.u32 %s72, 1
        %s173 = smul.addr %s172, 32
        %s174 = scalar_lea.vmem [#allocation4], %s173
        // Predicated region
        $region25: #{tpu_custom_call.1} parent=23 // pred_check
          %p175 = pneg %p82
        $region26: #{tpu_custom_call.1} parent=23 // pred_check_branch
          %177 = sbr.rel (%p175) target = $region28
        $region27: #{tpu_custom_call.1} parent=23 // pred_region
          %s179 = ssub.s32 512, 512
          %180 = vsyncadd %s171, %s179
          %s181 = smul.addr %s26, 4
          %s182 = sadd.s32 %s27, %s181
          %s183 = smul.addr %s182, 128
          %s184 = scalar_lea.hbm %s2, %s183
          %s185 = sshll.u32 %s174, 4
          %s186 = int_to_ptr.vmem [resolvable:$true] %s185
          %191 = dma.vmem_to_hbm [thread:$0]  %s186, 512, %s184, %s171, 128, 128, 8
        $region28: #{tpu_custom_call.1} parent=23 // pred_fallthru
          _
      $region24: #{tpu_custom_call.1} parent=5 // pred_fallthru
        _
      %p192 = scmp.le.s32.totalorder 2, %s17
      // Predicated region
      $region29: #{tpu_custom_call.1} parent=5 // pred_check
        %p193 = pneg %p192
      $region30: #{tpu_custom_call.1} parent=5 // pred_check_branch
        %195 = sbr.rel (%p193) target = $region32
      $region31: #{tpu_custom_call.1} parent=5 // pred_region
        %s196 = ssub.s32 %s17, 2
        // Predicated region
        $region33: #{tpu_custom_call.1} parent=31 // pred_check
          %p197 = pneg %p88
        $region34: #{tpu_custom_call.1} parent=31 // pred_check_branch
          %199 = sbr.rel (%p197) target = $region36
        $region35: #{tpu_custom_call.1} parent=31 // pred_region
          %s200 = sand.u32 %s73, 1
          %s201 = scalar_lea.sflag [#allocation5], %s200
          %s202 = sand.u32 %s73, 1
          %s203 = smul.addr %s202, 32
          %s204 = scalar_lea.vmem [#allocation4], %s203
          %205 = dma.done %s201, 512
        $region36: #{tpu_custom_call.1} parent=31 // pred_fallthru
          _
      $region32: #{tpu_custom_call.1} parent=5 // pred_fallthru
        _
    $region6: #{tpu_custom_call.1} parent=1 // loop_footer
      %s21 = sadd.s32 1, %s17
    $region7: #{tpu_custom_call.1} parent=1 // loop_footer_branch
      %16 = sbr.rel target = $region3
    $region8: #{tpu_custom_call.1} parent=1 // loop_exit
      _
    %206 = vsyncpa [#allocation5], 1
    %s207 = scalar_lea.sflag [#allocation5], 1
    %208 = vsyncpa %s207, 1

</llo_original>
